<compile_context>
chip_gen: v5e
topology: v5e:2x2
jax: 0.10.0
libtpu: 0.0.40
codegen_flags: <defaults>
</compile_context>

<pallas_src>
import jax
import jax.numpy as jnp
from jax.experimental import pallas as pl
from jax.experimental.pallas import tpu as pltpu

LN_EPS = 1e-5  # PyTorch nn.LayerNorm default


def _layer_norm(v, gamma, beta):
    """LayerNorm over the last (lane) dim. v: (T, C); gamma/beta: (1, C)."""
    mu = jnp.mean(v, axis=-1, keepdims=True)
    cen = v - mu
    var = jnp.mean(cen * cen, axis=-1, keepdims=True)
    inv = jax.lax.rsqrt(var + LN_EPS)
    return cen * inv * gamma + beta


def block_kernel(x_ref, ln1w_ref, ln1b_ref, wqkv_ref, wp_ref, bp_ref,
                 ln2w_ref, ln2b_ref, w1_ref, b1_ref, w2_ref, b2_ref, o_ref):
    """One batch element of the transformer Block.

    x_ref  : (T, C)               (batch dim squeezed away)
    wqkv   : (C, 3*H*S)  fused [q heads | k heads | v heads]
    wp     : (H*S, C)    bp: (1, C)
    ln*    : (1, C)
    w1     : (C, 4C)  b1: (1, 4C)   w2: (4C, C)  b2: (1, C)
    o_ref  : (T, C)
    """
    x = x_ref[...]                           # (T, C)
    T, C = x.shape
    H = wqkv_ref.shape[-1] // 3              # n_head * head_size (head_size == 1)

    # ---------------- LayerNorm 1 ----------------
    y = _layer_norm(x, ln1w_ref[...], ln1b_ref[...])

    # ---------------- fused Q/K/V projection (one lane-dense matmul) ----------------
    qkv = jnp.dot(y, wqkv_ref[...], preferred_element_type=jnp.float32)   # (T, 3H)
    qkv_t = qkv.T                                                         # (3H, T), T in lanes
    q_t = qkv_t[:H]                                                       # (H, T)
    k_t = qkv_t[H:2 * H]
    v_t = qkv_t[2 * H:]

    # ---------------- causal attention, all heads at once ----------------
    # NOTE: reference scales by C = n_embed (not head_size) -- reproduce exactly.
    scale = C ** -0.5
    # head_size == 1, so per-head scores are outer products (VPU broadcast).
    wei = q_t[:, :, None] * k_t[:, None, :] * scale                       # (H, T, T)

    row = jax.lax.broadcasted_iota(jnp.int32, (T, T), 0)
    col = jax.lax.broadcasted_iota(jnp.int32, (T, T), 1)
    causal = (col <= row)[None]                                           # (1, T, T)
    wei = jnp.where(causal, wei, jnp.float32(-1e30))                      # finite, no inf math

    # softmax over the key axis (lanes)
    wei = wei - jnp.max(wei, axis=-1, keepdims=True)
    p = jnp.exp(wei)
    p = p * pl.reciprocal(jnp.sum(p, axis=-1, keepdims=True), approx=True)
    # TODO(synk): attention dropout omitted (eval-mode identity).

    out_t = jnp.sum(p * v_t[:, None, :], axis=-1)                         # (H, T)

    # ---------------- concat heads + output projection ----------------
    cat = out_t.T                                                         # (T, H)
    sa = jnp.dot(cat, wp_ref[...], preferred_element_type=jnp.float32) + bp_ref[...]
    # TODO(synk): projection dropout omitted (eval-mode identity).
    x1 = x + sa                                                           # residual 1

    # ---------------- LayerNorm 2 + FeedForward ----------------
    z = _layer_norm(x1, ln2w_ref[...], ln2b_ref[...])
    h1 = jnp.dot(z, w1_ref[...], preferred_element_type=jnp.float32) + b1_ref[...]
    h1 = jnp.maximum(h1, 0.0)                                             # ReLU
    ff = jnp.dot(h1, w2_ref[...], preferred_element_type=jnp.float32) + b2_ref[...]
    # TODO(synk): ffwd dropout omitted (eval-mode identity).

    o_ref[...] = (x1 + ff).astype(o_ref.dtype)                            # residual 2


def block_forward(x, ln1_w, ln1_b, w_qkv, w_proj, b_proj,
                  ln2_w, ln2_b, w1, b1, w2, b2):
    """x: (B, T, C). All weights lane-dense 2D (see block_kernel docstring)."""
    B, T, C = x.shape

    def fixed(arr):
        # full-array block, grid-invariant index map -> fetched once, VMEM resident
        return pl.BlockSpec(arr.shape, lambda b: (0, 0))

    return pl.pallas_call(
        block_kernel,
        out_shape=jax.ShapeDtypeStruct((B, T, C), x.dtype),
        grid=(B,),
        in_specs=[
            pl.BlockSpec((pl.Squeezed(), T, C), lambda b: (b, 0, 0)),
            fixed(ln1_w), fixed(ln1_b),
            fixed(w_qkv),
            fixed(w_proj), fixed(b_proj),
            fixed(ln2_w), fixed(ln2_b),
            fixed(w1), fixed(b1),
            fixed(w2), fixed(b2),
        ],
        out_specs=pl.BlockSpec((pl.Squeezed(), T, C), lambda b: (b, 0, 0)),
        compiler_params=pltpu.CompilerParams(
            dimension_semantics=("parallel",)),
    )(x, ln1_w, ln1_b, w_qkv, w_proj, b_proj, ln2_w, ln2_b, w1, b1, w2, b2)


def reference_block(x, ln1_w, ln1_b, w_qkv, w_proj, b_proj,
                    ln2_w, ln2_b, w1, b1, w2, b2):
    """Pure-JAX reference matching the PyTorch Block forward (eval mode)."""
    B, T, C = x.shape
    H = w_qkv.shape[-1] // 3

    def ln(v, w, b):
        mu = v.mean(-1, keepdims=True)
        var = ((v - mu) ** 2).mean(-1, keepdims=True)
        return (v - mu) / jnp.sqrt(var + LN_EPS) * w[0] + b[0]

    y = ln(x, ln1_w, ln1_b)
    qkv = jnp.einsum('btc,cd->btd', y, w_qkv, precision='highest')        # (B, T, 3H)
    q, k, v = qkv[..., :H], qkv[..., H:2 * H], qkv[..., 2 * H:]
    wei = jnp.einsum('bth,buh->bhtu', q, k, precision='highest') * (C ** -0.5)
    mask = jnp.tril(jnp.ones((T, T), dtype=bool))
    wei = jnp.where(mask[None, None], wei, -jnp.inf)
    p = jax.nn.softmax(wei, axis=-1)
    out = jnp.einsum('bhtu,buh->bth', p, v, precision='highest')          # (B, T, H)
    sa = jnp.einsum('bth,hc->btc', out, w_proj, precision='highest') + b_proj[0]
    x = x + sa
    z = ln(x, ln2_w, ln2_b)
    h1 = jax.nn.relu(jnp.einsum('btc,cf->btf', z, w1, precision='highest') + b1[0])
    ff = jnp.einsum('btf,fc->btc', h1, w2, precision='highest') + b2[0]
    return x + ff


if __name__ == "__main__":
    # Module constants: n_embed=128, n_head=2, head_size = n_head // n_head = 1.
    B, T = 2, 8
    C = 128            # n_embed
    H = 2              # n_head
    S = 1              # head_size
    F = 4 * C          # ffwd hidden

    key = jax.random.PRNGKey(0)
    ks = jax.random.split(key, 14)

    def lin(k, shape, scale=0.02):
        return jax.random.normal(k, shape, dtype=jnp.float32) * scale

    x = jax.random.normal(ks[0], (B, T, C), dtype=jnp.float32)

    # per-head q/k/v weights stacked column-wise, then fused [q | k | v]
    wq = lin(ks[1], (C, H * S))
    wk = lin(ks[2], (C, H * S))
    wv = lin(ks[3], (C, H * S))
    w_qkv = jnp.concatenate([wq, wk, wv], axis=1)                         # (C, 3*H*S)

    w_proj = lin(ks[4], (H * S, C))
    b_proj = lin(ks[5], (1, C))
    ln1_w = 1.0 + lin(ks[6], (1, C), 0.1)
    ln1_b = lin(ks[7], (1, C), 0.1)
    ln2_w = 1.0 + lin(ks[8], (1, C), 0.1)
    ln2_b = lin(ks[9], (1, C), 0.1)
    w1 = lin(ks[10], (C, F))
    b1 = lin(ks[11], (1, F))
    w2 = lin(ks[12], (F, C))
    b2 = lin(ks[13], (1, C))

    out = block_forward(x, ln1_w, ln1_b, w_qkv, w_proj, b_proj,
                        ln2_w, ln2_b, w1, b1, w2, b2)
    out = jax.block_until_ready(out)

    ref = reference_block(x, ln1_w, ln1_b, w_qkv, w_proj, b_proj,
                          ln2_w, ln2_b, w1, b1, w2, b2)

    assert out.shape == (B, T, C)
    assert bool(jnp.allclose(out, ref, atol=1e-3, rtol=1e-3)), "mismatch vs reference"

    print("KERNEL_OK")
</pallas_src>

<mosaic_0001>
module attributes {stable_mosaic.version = 11 : i64} {
  func.func @block_kernel(%arg0: i32, %arg1: memref<1x8x128xf32, #tpu.memory_space<vmem>>, %arg2: memref<1x128xf32, #tpu.memory_space<vmem>>, %arg3: memref<1x128xf32, #tpu.memory_space<vmem>>, %arg4: memref<128x6xf32, #tpu.memory_space<vmem>>, %arg5: memref<2x128xf32, #tpu.memory_space<vmem>>, %arg6: memref<1x128xf32, #tpu.memory_space<vmem>>, %arg7: memref<1x128xf32, #tpu.memory_space<vmem>>, %arg8: memref<1x128xf32, #tpu.memory_space<vmem>>, %arg9: memref<128x512xf32, #tpu.memory_space<vmem>>, %arg10: memref<1x512xf32, #tpu.memory_space<vmem>>, %arg11: memref<512x128xf32, #tpu.memory_space<vmem>>, %arg12: memref<1x128xf32, #tpu.memory_space<vmem>>, %arg13: memref<1x8x128xf32, #tpu.memory_space<vmem>>) attributes {dimension_semantics = [#tpu.dimension_semantics<parallel>], iteration_bounds = array<i64: 2>, scalar_prefetch = 0 : i64, scratch_operands = 0 : i64, tpu.core_type = #tpu.core_type<tc>, window_params = [{transform_indices = @transform_0, window_bounds = array<i64: 1, 8, 128>}, {pipeline_mode = #tpu.pipeline_mode<synchronous>, transform_indices = @transform_1, window_bounds = array<i64: 1, 128>}, {pipeline_mode = #tpu.pipeline_mode<synchronous>, transform_indices = @transform_2, window_bounds = array<i64: 1, 128>}, {pipeline_mode = #tpu.pipeline_mode<synchronous>, transform_indices = @transform_3, window_bounds = array<i64: 128, 6>}, {pipeline_mode = #tpu.pipeline_mode<synchronous>, transform_indices = @transform_4, window_bounds = array<i64: 2, 128>}, {pipeline_mode = #tpu.pipeline_mode<synchronous>, transform_indices = @transform_5, window_bounds = array<i64: 1, 128>}, {pipeline_mode = #tpu.pipeline_mode<synchronous>, transform_indices = @transform_6, window_bounds = array<i64: 1, 128>}, {pipeline_mode = #tpu.pipeline_mode<synchronous>, transform_indices = @transform_7, window_bounds = array<i64: 1, 128>}, {pipeline_mode = #tpu.pipeline_mode<synchronous>, transform_indices = @transform_8, window_bounds = array<i64: 128, 512>}, {pipeline_mode = #tpu.pipeline_mode<synchronous>, transform_indices = @transform_9, window_bounds = array<i64: 1, 512>}, {pipeline_mode = #tpu.pipeline_mode<synchronous>, transform_indices = @transform_10, window_bounds = array<i64: 512, 128>}, {pipeline_mode = #tpu.pipeline_mode<synchronous>, transform_indices = @transform_11, window_bounds = array<i64: 1, 128>}, {transform_indices = @transform_12, window_bounds = array<i64: 1, 8, 128>}]} {
    %c0 = arith.constant 0 : index
    %c0_0 = arith.constant 0 : index
    %c0_1 = arith.constant 0 : index
    %0 = vector.load %arg1[%c0, %c0_0, %c0_1] : memref<1x8x128xf32, #tpu.memory_space<vmem>>, vector<1x8x128xf32>
    %1 = vector.shape_cast %0 : vector<1x8x128xf32> to vector<8x128xf32>
    %c0_2 = arith.constant 0 : index
    %c0_3 = arith.constant 0 : index
    %2 = vector.load %arg2[%c0_2, %c0_3] : memref<1x128xf32, #tpu.memory_space<vmem>>, vector<1x128xf32>
    %c0_4 = arith.constant 0 : index
    %c0_5 = arith.constant 0 : index
    %3 = vector.load %arg3[%c0_4, %c0_5] : memref<1x128xf32, #tpu.memory_space<vmem>>, vector<1x128xf32>
    %cst = arith.constant dense<0.000000e+00> : vector<8xf32>
    %4 = vector.multi_reduction <add>, %1, %cst [1] : vector<8x128xf32> to vector<8xf32>
    %5 = vector.shape_cast %4 : vector<8xf32> to vector<8x1xf32>
    %cst_6 = arith.constant 1.280000e+02 : f32
    %6 = vector.broadcast %cst_6 : f32 to vector<8x1xf32>
    %7 = arith.divf %5, %6 : vector<8x1xf32>
    %8 = vector.broadcast %7 : vector<8x1xf32> to vector<8x128xf32>
    %9 = arith.subf %1, %8 : vector<8x128xf32>
    %10 = arith.mulf %9, %9 : vector<8x128xf32>
    %cst_7 = arith.constant dense<0.000000e+00> : vector<8xf32>
    %11 = vector.multi_reduction <add>, %10, %cst_7 [1] : vector<8x128xf32> to vector<8xf32>
    %12 = vector.shape_cast %11 : vector<8xf32> to vector<8x1xf32>
    %cst_8 = arith.constant 1.280000e+02 : f32
    %13 = vector.broadcast %cst_8 : f32 to vector<8x1xf32>
    %14 = arith.divf %12, %13 : vector<8x1xf32>
    %cst_9 = arith.constant 9.99999974E-6 : f32
    %15 = vector.broadcast %cst_9 : f32 to vector<8x1xf32>
    %16 = arith.addf %14, %15 : vector<8x1xf32>
    %17 = math.rsqrt %16 : vector<8x1xf32>
    %18 = vector.broadcast %17 : vector<8x1xf32> to vector<8x128xf32>
    %19 = arith.mulf %9, %18 : vector<8x128xf32>
    %20 = vector.broadcast %2 : vector<1x128xf32> to vector<8x128xf32>
    %21 = arith.mulf %19, %20 : vector<8x128xf32>
    %22 = vector.broadcast %3 : vector<1x128xf32> to vector<8x128xf32>
    %23 = arith.addf %21, %22 : vector<8x128xf32>
    %c0_10 = arith.constant 0 : index
    %c0_11 = arith.constant 0 : index
    %24 = vector.load %arg4[%c0_10, %c0_11] : memref<128x6xf32, #tpu.memory_space<vmem>>, vector<128x6xf32>
    %cst_12 = arith.constant dense<0.000000e+00> : vector<8x6xf32>
    %25 = tpu.matmul %23, %24, %cst_12 {dimension_numbers = #tpu.dot_dimension_numbers<[1], [0], [0], [1], [0, 0, 1, 1], [], []>} : vector<8x128xf32>, vector<128x6xf32>, vector<8x6xf32> -> vector<8x6xf32>
    %26 = tpu.transpose %25, [1, 0] : vector<8x6xf32> -> vector<6x8xf32>
    %27 = vector.extract_strided_slice %26 {offsets = [0, 0], sizes = [2, 8], strides = [1, 1]} : vector<6x8xf32> to vector<2x8xf32>
    %28 = vector.extract_strided_slice %26 {offsets = [2, 0], sizes = [2, 8], strides = [1, 1]} : vector<6x8xf32> to vector<2x8xf32>
    %29 = vector.extract_strided_slice %26 {offsets = [4, 0], sizes = [2, 8], strides = [1, 1]} : vector<6x8xf32> to vector<2x8xf32>
    %30 = vector.shape_cast %27 : vector<2x8xf32> to vector<2x8x1xf32>
    %31 = vector.shape_cast %28 : vector<2x8xf32> to vector<2x1x8xf32>
    %32 = vector.broadcast %30 : vector<2x8x1xf32> to vector<2x8x8xf32>
    %33 = vector.broadcast %31 : vector<2x1x8xf32> to vector<2x8x8xf32>
    %34 = arith.mulf %32, %33 : vector<2x8x8xf32>
    %cst_13 = arith.constant 0.0883883461 : f32
    %35 = vector.broadcast %cst_13 : f32 to vector<2x8x8xf32>
    %36 = arith.mulf %34, %35 : vector<2x8x8xf32>
    %37 = tpu.iota {dimensions = array<i32: 0>} : vector<8x8xi32>
    %38 = tpu.iota {dimensions = array<i32: 1>} : vector<8x8xi32>
    %39 = arith.cmpi sle, %38, %37 : vector<8x8xi32>
    %40 = vector.shape_cast %39 : vector<8x8xi1> to vector<1x8x8xi1>
    %cst_14 = arith.constant -1.000000e+30 : f32
    %41 = vector.shape_cast %40 : vector<1x8x8xi1> to vector<1x8x8xi1>
    %42 = vector.broadcast %41 : vector<1x8x8xi1> to vector<2x8x8xi1>
    %43 = vector.broadcast %cst_14 : f32 to vector<2x8x8xf32>
    %44 = arith.select %42, %36, %43 : vector<2x8x8xi1>, vector<2x8x8xf32>
    %cst_15 = arith.constant dense<0xFF800000> : vector<2x8xf32>
    %45 = vector.multi_reduction <maximumf>, %44, %cst_15 [2] : vector<2x8x8xf32> to vector<2x8xf32>
    %46 = vector.shape_cast %45 : vector<2x8xf32> to vector<2x8x1xf32>
    %47 = vector.broadcast %46 : vector<2x8x1xf32> to vector<2x8x8xf32>
    %48 = arith.subf %44, %47 : vector<2x8x8xf32>
    %49 = math.exp %48 : vector<2x8x8xf32>
    %cst_16 = arith.constant dense<0.000000e+00> : vector<2x8xf32>
    %50 = vector.multi_reduction <add>, %49, %cst_16 [2] : vector<2x8x8xf32> to vector<2x8xf32>
    %51 = vector.shape_cast %50 : vector<2x8xf32> to vector<2x8x1xf32>
    %52 = tpu.reciprocal %51 {approx = true} : vector<2x8x1xf32> -> vector<2x8x1xf32>
    %53 = vector.broadcast %52 : vector<2x8x1xf32> to vector<2x8x8xf32>
    %54 = arith.mulf %49, %53 : vector<2x8x8xf32>
    %55 = vector.shape_cast %29 : vector<2x8xf32> to vector<2x1x8xf32>
    %56 = vector.broadcast %55 : vector<2x1x8xf32> to vector<2x8x8xf32>
    %57 = arith.mulf %54, %56 : vector<2x8x8xf32>
    %cst_17 = arith.constant dense<0.000000e+00> : vector<2x8xf32>
    %58 = vector.multi_reduction <add>, %57, %cst_17 [2] : vector<2x8x8xf32> to vector<2x8xf32>
    %59 = tpu.transpose %58, [1, 0] : vector<2x8xf32> -> vector<8x2xf32>
    %c0_18 = arith.constant 0 : index
    %c0_19 = arith.constant 0 : index
    %60 = vector.load %arg5[%c0_18, %c0_19] : memref<2x128xf32, #tpu.memory_space<vmem>>, vector<2x128xf32>
    %cst_20 = arith.constant dense<0.000000e+00> : vector<8x128xf32>
    %61 = tpu.matmul %59, %60, %cst_20 {dimension_numbers = #tpu.dot_dimension_numbers<[1], [0], [0], [1], [0, 0, 1, 1], [], []>} : vector<8x2xf32>, vector<2x128xf32>, vector<8x128xf32> -> vector<8x128xf32>
    %c0_21 = arith.constant 0 : index
    %c0_22 = arith.constant 0 : index
    %62 = vector.load %arg6[%c0_21, %c0_22] : memref<1x128xf32, #tpu.memory_space<vmem>>, vector<1x128xf32>
    %63 = vector.broadcast %62 : vector<1x128xf32> to vector<8x128xf32>
    %64 = arith.addf %61, %63 : vector<8x128xf32>
    %65 = arith.addf %1, %64 : vector<8x128xf32>
    %c0_23 = arith.constant 0 : index
    %c0_24 = arith.constant 0 : index
    %66 = vector.load %arg7[%c0_23, %c0_24] : memref<1x128xf32, #tpu.memory_space<vmem>>, vector<1x128xf32>
    %c0_25 = arith.constant 0 : index
    %c0_26 = arith.constant 0 : index
    %67 = vector.load %arg8[%c0_25, %c0_26] : memref<1x128xf32, #tpu.memory_space<vmem>>, vector<1x128xf32>
    %cst_27 = arith.constant dense<0.000000e+00> : vector<8xf32>
    %68 = vector.multi_reduction <add>, %65, %cst_27 [1] : vector<8x128xf32> to vector<8xf32>
    %69 = vector.shape_cast %68 : vector<8xf32> to vector<8x1xf32>
    %cst_28 = arith.constant 1.280000e+02 : f32
    %70 = vector.broadcast %cst_28 : f32 to vector<8x1xf32>
    %71 = arith.divf %69, %70 : vector<8x1xf32>
    %72 = vector.broadcast %71 : vector<8x1xf32> to vector<8x128xf32>
    %73 = arith.subf %65, %72 : vector<8x128xf32>
    %74 = arith.mulf %73, %73 : vector<8x128xf32>
    %cst_29 = arith.constant dense<0.000000e+00> : vector<8xf32>
    %75 = vector.multi_reduction <add>, %74, %cst_29 [1] : vector<8x128xf32> to vector<8xf32>
    %76 = vector.shape_cast %75 : vector<8xf32> to vector<8x1xf32>
    %cst_30 = arith.constant 1.280000e+02 : f32
    %77 = vector.broadcast %cst_30 : f32 to vector<8x1xf32>
    %78 = arith.divf %76, %77 : vector<8x1xf32>
    %cst_31 = arith.constant 9.99999974E-6 : f32
    %79 = vector.broadcast %cst_31 : f32 to vector<8x1xf32>
    %80 = arith.addf %78, %79 : vector<8x1xf32>
    %81 = math.rsqrt %80 : vector<8x1xf32>
    %82 = vector.broadcast %81 : vector<8x1xf32> to vector<8x128xf32>
    %83 = arith.mulf %73, %82 : vector<8x128xf32>
    %84 = vector.broadcast %66 : vector<1x128xf32> to vector<8x128xf32>
    %85 = arith.mulf %83, %84 : vector<8x128xf32>
    %86 = vector.broadcast %67 : vector<1x128xf32> to vector<8x128xf32>
    %87 = arith.addf %85, %86 : vector<8x128xf32>
    %c0_32 = arith.constant 0 : index
    %c0_33 = arith.constant 0 : index
    %88 = vector.load %arg9[%c0_32, %c0_33] : memref<128x512xf32, #tpu.memory_space<vmem>>, vector<128x512xf32>
    %cst_34 = arith.constant dense<0.000000e+00> : vector<8x512xf32>
    %89 = tpu.matmul %87, %88, %cst_34 {dimension_numbers = #tpu.dot_dimension_numbers<[1], [0], [0], [1], [0, 0, 1, 1], [], []>} : vector<8x128xf32>, vector<128x512xf32>, vector<8x512xf32> -> vector<8x512xf32>
    %c0_35 = arith.constant 0 : index
    %c0_36 = arith.constant 0 : index
    %90 = vector.load %arg10[%c0_35, %c0_36] : memref<1x512xf32, #tpu.memory_space<vmem>>, vector<1x512xf32>
    %91 = vector.broadcast %90 : vector<1x512xf32> to vector<8x512xf32>
    %92 = arith.addf %89, %91 : vector<8x512xf32>
    %cst_37 = arith.constant 0.000000e+00 : f32
    %93 = vector.broadcast %cst_37 : f32 to vector<8x512xf32>
    %94 = arith.maximumf %92, %93 : vector<8x512xf32>
    %c0_38 = arith.constant 0 : index
    %c0_39 = arith.constant 0 : index
    %95 = vector.load %arg11[%c0_38, %c0_39] : memref<512x128xf32, #tpu.memory_space<vmem>>, vector<512x128xf32>
    %cst_40 = arith.constant dense<0.000000e+00> : vector<8x128xf32>
    %96 = tpu.matmul %94, %95, %cst_40 {dimension_numbers = #tpu.dot_dimension_numbers<[1], [0], [0], [1], [0, 0, 1, 1], [], []>} : vector<8x512xf32>, vector<512x128xf32>, vector<8x128xf32> -> vector<8x128xf32>
    %c0_41 = arith.constant 0 : index
    %c0_42 = arith.constant 0 : index
    %97 = vector.load %arg12[%c0_41, %c0_42] : memref<1x128xf32, #tpu.memory_space<vmem>>, vector<1x128xf32>
    %98 = vector.broadcast %97 : vector<1x128xf32> to vector<8x128xf32>
    %99 = arith.addf %96, %98 : vector<8x128xf32>
    %100 = arith.addf %65, %99 : vector<8x128xf32>
    %c0_43 = arith.constant 0 : index
    %c0_44 = arith.constant 0 : index
    %c0_45 = arith.constant 0 : index
    %101 = vector.load %arg13[%c0_43, %c0_44, %c0_45] : memref<1x8x128xf32, #tpu.memory_space<vmem>>, vector<1x8x128xf32>
    %102 = vector.shape_cast %101 : vector<1x8x128xf32> to vector<8x128xf32>
    %103 = vector.shape_cast %100 : vector<8x128xf32> to vector<1x8x128xf32>
    tpu.vector_store %arg13[%c0_43, %c0_44, %c0_45], %103 {strides = array<i32>} : memref<1x8x128xf32, #tpu.memory_space<vmem>>, vector<1x8x128xf32>,
    return
  }
  func.func @transform_0(%arg0: i32) -> (i32, i32, i32) {
    %c0_i32 = arith.constant 0 : i32
    %c0_i32_0 = arith.constant 0 : i32
    %c0_i32_1 = arith.constant 0 : i32
    return %arg0, %c0_i32, %c0_i32_0 : i32, i32, i32
  }
  func.func @transform_1(%arg0: i32) -> (i32, i32) {
    %c0_i32 = arith.constant 0 : i32
    %c0_i32_0 = arith.constant 0 : i32
    %c0_i32_1 = arith.constant 0 : i32
    return %c0_i32, %c0_i32_0 : i32, i32
  }
  func.func @transform_2(%arg0: i32) -> (i32, i32) {
    %c0_i32 = arith.constant 0 : i32
    %c0_i32_0 = arith.constant 0 : i32
    %c0_i32_1 = arith.constant 0 : i32
    return %c0_i32, %c0_i32_0 : i32, i32
  }
  func.func @transform_3(%arg0: i32) -> (i32, i32) {
    %c0_i32 = arith.constant 0 : i32
    %c0_i32_0 = arith.constant 0 : i32
    %c0_i32_1 = arith.constant 0 : i32
    return %c0_i32, %c0_i32_0 : i32, i32
  }
  func.func @transform_4(%arg0: i32) -> (i32, i32) {
    %c0_i32 = arith.constant 0 : i32
    %c0_i32_0 = arith.constant 0 : i32
    %c0_i32_1 = arith.constant 0 : i32
    return %c0_i32, %c0_i32_0 : i32, i32
  }
  func.func @transform_5(%arg0: i32) -> (i32, i32) {
    %c0_i32 = arith.constant 0 : i32
    %c0_i32_0 = arith.constant 0 : i32
    %c0_i32_1 = arith.constant 0 : i32
    return %c0_i32, %c0_i32_0 : i32, i32
  }
  func.func @transform_6(%arg0: i32) -> (i32, i32) {
    %c0_i32 = arith.constant 0 : i32
    %c0_i32_0 = arith.constant 0 : i32
    %c0_i32_1 = arith.constant 0 : i32
    return %c0_i32, %c0_i32_0 : i32, i32
  }
  func.func @transform_7(%arg0: i32) -> (i32, i32) {
    %c0_i32 = arith.constant 0 : i32
    %c0_i32_0 = arith.constant 0 : i32
    %c0_i32_1 = arith.constant 0 : i32
    return %c0_i32, %c0_i32_0 : i32, i32
  }
  func.func @transform_8(%arg0: i32) -> (i32, i32) {
    %c0_i32 = arith.constant 0 : i32
    %c0_i32_0 = arith.constant 0 : i32
    %c0_i32_1 = arith.constant 0 : i32
    return %c0_i32, %c0_i32_0 : i32, i32
  }
  func.func @transform_9(%arg0: i32) -> (i32, i32) {
    %c0_i32 = arith.constant 0 : i32
    %c0_i32_0 = arith.constant 0 : i32
    %c0_i32_1 = arith.constant 0 : i32
    return %c0_i32, %c0_i32_0 : i32, i32
  }
  func.func @transform_10(%arg0: i32) -> (i32, i32) {
    %c0_i32 = arith.constant 0 : i32
    %c0_i32_0 = arith.constant 0 : i32
    %c0_i32_1 = arith.constant 0 : i32
    return %c0_i32, %c0_i32_0 : i32, i32
  }
  func.func @transform_11(%arg0: i32) -> (i32, i32) {
    %c0_i32 = arith.constant 0 : i32
    %c0_i32_0 = arith.constant 0 : i32
    %c0_i32_1 = arith.constant 0 : i32
    return %c0_i32, %c0_i32_0 : i32, i32
  }
  func.func @transform_12(%arg0: i32) -> (i32, i32, i32) {
    %c0_i32 = arith.constant 0 : i32
    %c0_i32_0 = arith.constant 0 : i32
    %c0_i32_1 = arith.constant 0 : i32
    return %arg0, %c0_i32, %c0_i32_0 : i32, i32, i32
  }
}

</mosaic_0001>

<llo_original>
// kernel: tpu_custom_call.1
$region0: #{tpu_custom_call.1}
  #allocation0 [shape = 'u32[]', space=smem, size = 0x4, offset = 0x4, fixed_abs, tag = 'smem constant byte address 0x4 - core index']
  #allocation1 [shape = 'u32[72,128]{1,0:T(1,128)}', space=vmem, size = 0x9000, scoped, tag = 'internal scratch']
  %s0 = inlined_call_operand.vmem [shape: f32[2,8,128], index: 0, kind: input, shape index: {}]
  %s1 = inlined_call_operand.vmem [shape: f32[1,128], index: 1, kind: input, shape index: {}]
  %s2 = inlined_call_operand.vmem [shape: f32[1,128], index: 2, kind: input, shape index: {}]
  %s3 = inlined_call_operand.vmem [shape: f32[128,6], index: 3, kind: input, shape index: {}]
  %s4 = inlined_call_operand.vmem [shape: f32[2,128], index: 4, kind: input, shape index: {}]
  %s5 = inlined_call_operand.vmem [shape: f32[1,128], index: 5, kind: input, shape index: {}]
  %s6 = inlined_call_operand.vmem [shape: f32[1,128], index: 6, kind: input, shape index: {}]
  %s7 = inlined_call_operand.vmem [shape: f32[1,128], index: 7, kind: input, shape index: {}]
  %s8 = inlined_call_operand.hbm [shape: f32[128,512], index: 8, kind: input, shape index: {}]
  %s9 = inlined_call_operand.vmem [shape: f32[1,512], index: 9, kind: input, shape index: {}]
  %s10 = inlined_call_operand.hbm [shape: f32[512,128], index: 10, kind: input, shape index: {}]
  %s11 = inlined_call_operand.vmem [shape: f32[1,128], index: 11, kind: input, shape index: {}]
  %s12 = inlined_call_operand.hbm [shape: f32[2,8,128], index: 12, kind: output, shape index: {}]
  %s13 = sld [smem:[#allocation0]]
  $region89: #{tpu_custom_call.1} parent=0
    _
  %s15 = ssub.s32 1, %s13
  %s16 = scalar_select 0, %s15, %s13
  $region1: #{tpu_custom_call.1} parent=0
    #allocation2 [shape = 'u8[262144]{0}', space=vmem, size = 0x40000, scoped, tag = 'input window, operand 8, single buffered']
    #allocation3 [shape = 's32[2]{0}', space=sflag, size = 0x8, scoped, tag = 'scoped memory for tpu_custom_call.1']
    #allocation4 [shape = 's32[2]{0}', space=sflag, size = 0x8, scoped, tag = 'scoped memory for tpu_custom_call.1']
    #allocation5 [shape = 'u8[262144]{0}', space=vmem, size = 0x40000, scoped, tag = 'input window, operand 10, single buffered']
    #allocation6 [shape = 's32[1]{0}', space=sflag, size = 0x4, scoped, tag = 'scoped memory for tpu_custom_call.1']
    #allocation7 [shape = 'u8[8192]{0}', space=vmem, size = 0x2000, scoped, tag = 'output window, operand 0']
    %17 = vsyncpa [#allocation3], 0
    %18 = vsyncpa [#allocation6], 0
    %19 = vsyncpa [#allocation4], 0
    %s20 = scalar_lea.sflag [#allocation4], 1
    %21 = vsyncpa %s20, 0
    loop: start=0, step=1, limit=4
    $region2: #{tpu_custom_call.1} parent=1 // loop_pre_header
      _
    $region3: #{tpu_custom_call.1} parent=1 // loop_header
      %s23 = sphi 0, %s27
      %p24 = scmp.ge.s32.totalorder %s23, 4
      %s33 = sphi 0, %s35
      %s36 = sphi 0, %s33
      %s37 = sphi 0, %s36
      %s53 = sphi 0, %s37
      %s57 = sphi 0, %s57
      %s59 = sphi 0, %s57
      %s60 = sphi 0, %s59
      %s74 = sphi 0, %s60
      %s78 = sphi 0, %s78
      %s80 = sphi 0, %s78
      %s81 = sphi 0, %s80
      %s95 = sphi 0, %s81
      %s99 = sphi 0, %s99
      %s101 = sphi 0, %s99
      %s102 = sphi 0, %s101
      %s116 = sphi 0, %s102
      %s120 = sphi 0, %s120
      %s122 = sphi 0, %s120
      %s123 = sphi 0, %s122
      %s137 = sphi 0, %s123
      %s141 = sphi 0, %s141
      %s143 = sphi 0, %s141
      %s144 = sphi 0, %s143
      %s158 = sphi 0, %s144
      %s162 = sphi 0, %s162
      %s164 = sphi 0, %s162
      %s165 = sphi 0, %s164
      %s179 = sphi 0, %s165
      %s183 = sphi 0, %s183
      %s185 = sphi 0, %s183
      %s186 = sphi 0, %s185
      %s200 = sphi 0, %s186
      %s204 = sphi 0, %s204
      %s206 = sphi 0, %s204
      %s207 = sphi 0, %s206
      %s221 = sphi 0, %s207
      %s225 = sphi 0, %s225
      %s227 = sphi 0, %s225
      %s228 = sphi 0, %s227
      %s242 = sphi 0, %s228
      %s246 = sphi 0, %s246
      %s248 = sphi 0, %s246
      %s249 = sphi 0, %s248
      %s263 = sphi 0, %s249
      %s267 = sphi 0, %s267
      %s269 = sphi 0, %s267
      %s270 = sphi 0, %s269
      %s284 = sphi 0, %s270
      %s290 = sphi 0, %s292
      %s293 = sphi 0, %s290
      %s294 = sphi 0, %s293
      %s310 = sphi 0, %s294
    $region4: #{tpu_custom_call.1} parent=1 // loop_header_branch
      %26 = sbr.rel (%p24) target = $region8
    $region5: #{tpu_custom_call.1} parent=1 // loop_body
      %s28 = ssub.s32 %s23, 1
      %s29 = ssub.s32 %s23, 2
      %s30 = sadd.s32 %s23, 1
      %s31 = ssub.s32 %s23, %s30
      %p32 = scmp.eq.s32.totalorder %s31, 0
      %s34 = sadd.s32 %s33, 1
      %s35 = scalar_select %p32, %s33, %s34
      %p38 = pneg %p32
      %p39 = scmp.eq.s32.totalorder %s23, 1
      %p40 = por %p38, %p39
      %p41 = scmp.ne.s32.totalorder %s33, %s36
      %p42 = scmp.eq.s32.totalorder %s23, 0
      %p43 = por %p41, %p42
      %p44 = scmp.ne.s32.totalorder %s33, %s36
      %p45 = scmp.eq.s32.totalorder %s28, 1
      %p46 = por %p44, %p45
      %p47 = scmp.ne.s32.totalorder %s36, %s37
      %p48 = scmp.eq.s32.totalorder %s28, 0
      %p49 = por %p47, %p48
      %p50 = scmp.ne.s32.totalorder %s36, %s37
      %p51 = scmp.eq.s32.totalorder %s29, 1
      %p52 = por %p50, %p51
      %p54 = scmp.ne.s32.totalorder %s37, %s53
      %p55 = scmp.eq.s32.totalorder %s29, 0
      %p56 = por %p54, %p55
      %s58 = sadd.s32 %s57, 1
      %p61 = scmp.eq.s32.totalorder %s23, 1
      %p62 = scmp.ne.s32.totalorder %s57, %s59
      %p63 = scmp.eq.s32.totalorder %s23, 0
      %p64 = por %p62, %p63
      %p65 = scmp.ne.s32.totalorder %s57, %s59
      %p66 = scmp.eq.s32.totalorder %s28, 1
      %p67 = por %p65, %p66
      %p68 = scmp.ne.s32.totalorder %s59, %s60
      %p69 = scmp.eq.s32.totalorder %s28, 0
      %p70 = por %p68, %p69
      %p71 = scmp.ne.s32.totalorder %s59, %s60
      %p72 = scmp.eq.s32.totalorder %s29, 1
      %p73 = por %p71, %p72
      %p75 = scmp.ne.s32.totalorder %s60, %s74
      %p76 = scmp.eq.s32.totalorder %s29, 0
      %p77 = por %p75, %p76
      %s79 = sadd.s32 %s78, 1
      %p82 = scmp.eq.s32.totalorder %s23, 1
      %p83 = scmp.ne.s32.totalorder %s78, %s80
      %p84 = scmp.eq.s32.totalorder %s23, 0
      %p85 = por %p83, %p84
      %p86 = scmp.ne.s32.totalorder %s78, %s80
      %p87 = scmp.eq.s32.totalorder %s28, 1
      %p88 = por %p86, %p87
      %p89 = scmp.ne.s32.totalorder %s80, %s81
      %p90 = scmp.eq.s32.totalorder %s28, 0
      %p91 = por %p89, %p90
      %p92 = scmp.ne.s32.totalorder %s80, %s81
      %p93 = scmp.eq.s32.totalorder %s29, 1
      %p94 = por %p92, %p93
      %p96 = scmp.ne.s32.totalorder %s81, %s95
      %p97 = scmp.eq.s32.totalorder %s29, 0
      %p98 = por %p96, %p97
      %s100 = sadd.s32 %s99, 1
      %p103 = scmp.eq.s32.totalorder %s23, 1
      %p104 = scmp.ne.s32.totalorder %s99, %s101
      %p105 = scmp.eq.s32.totalorder %s23, 0
      %p106 = por %p104, %p105
      %p107 = scmp.ne.s32.totalorder %s99, %s101
      %p108 = scmp.eq.s32.totalorder %s28, 1
      %p109 = por %p107, %p108
      %p110 = scmp.ne.s32.totalorder %s101, %s102
      %p111 = scmp.eq.s32.totalorder %s28, 0
      %p112 = por %p110, %p111
      %p113 = scmp.ne.s32.totalorder %s101, %s102
      %p114 = scmp.eq.s32.totalorder %s29, 1
      %p115 = por %p113, %p114
      %p117 = scmp.ne.s32.totalorder %s102, %s116
      %p118 = scmp.eq.s32.totalorder %s29, 0
      %p119 = por %p117, %p118
      %s121 = sadd.s32 %s120, 1
      %p124 = scmp.eq.s32.totalorder %s23, 1
      %p125 = scmp.ne.s32.totalorder %s120, %s122
      %p126 = scmp.eq.s32.totalorder %s23, 0
      %p127 = por %p125, %p126
      %p128 = scmp.ne.s32.totalorder %s120, %s122
      %p129 = scmp.eq.s32.totalorder %s28, 1
      %p130 = por %p128, %p129
      %p131 = scmp.ne.s32.totalorder %s122, %s123
      %p132 = scmp.eq.s32.totalorder %s28, 0
      %p133 = por %p131, %p132
      %p134 = scmp.ne.s32.totalorder %s122, %s123
      %p135 = scmp.eq.s32.totalorder %s29, 1
      %p136 = por %p134, %p135
      %p138 = scmp.ne.s32.totalorder %s123, %s137
      %p139 = scmp.eq.s32.totalorder %s29, 0
      %p140 = por %p138, %p139
      %s142 = sadd.s32 %s141, 1
      %p145 = scmp.eq.s32.totalorder %s23, 1
      %p146 = scmp.ne.s32.totalorder %s141, %s143
      %p147 = scmp.eq.s32.totalorder %s23, 0
      %p148 = por %p146, %p147
      %p149 = scmp.ne.s32.totalorder %s141, %s143
      %p150 = scmp.eq.s32.totalorder %s28, 1
      %p151 = por %p149, %p150
      %p152 = scmp.ne.s32.totalorder %s143, %s144
      %p153 = scmp.eq.s32.totalorder %s28, 0
      %p154 = por %p152, %p153
      %p155 = scmp.ne.s32.totalorder %s143, %s144
      %p156 = scmp.eq.s32.totalorder %s29, 1
      %p157 = por %p155, %p156
      %p159 = scmp.ne.s32.totalorder %s144, %s158
      %p160 = scmp.eq.s32.totalorder %s29, 0
      %p161 = por %p159, %p160
      %s163 = sadd.s32 %s162, 1
      %p166 = scmp.eq.s32.totalorder %s23, 1
      %p167 = scmp.ne.s32.totalorder %s162, %s164
      %p168 = scmp.eq.s32.totalorder %s23, 0
      %p169 = por %p167, %p168
      %p170 = scmp.ne.s32.totalorder %s162, %s164
      %p171 = scmp.eq.s32.totalorder %s28, 1
      %p172 = por %p170, %p171
      %p173 = scmp.ne.s32.totalorder %s164, %s165
      %p174 = scmp.eq.s32.totalorder %s28, 0
      %p175 = por %p173, %p174
      %p176 = scmp.ne.s32.totalorder %s164, %s165
      %p177 = scmp.eq.s32.totalorder %s29, 1
      %p178 = por %p176, %p177
      %p180 = scmp.ne.s32.totalorder %s165, %s179
      %p181 = scmp.eq.s32.totalorder %s29, 0
      %p182 = por %p180, %p181
      %s184 = sadd.s32 %s183, 1
      %p187 = scmp.eq.s32.totalorder %s23, 1
      %p188 = scmp.ne.s32.totalorder %s183, %s185
      %p189 = scmp.eq.s32.totalorder %s23, 0
      %p190 = por %p188, %p189
      %p191 = scmp.ne.s32.totalorder %s183, %s185
      %p192 = scmp.eq.s32.totalorder %s28, 1
      %p193 = por %p191, %p192
      %p194 = scmp.ne.s32.totalorder %s185, %s186
      %p195 = scmp.eq.s32.totalorder %s28, 0
      %p196 = por %p194, %p195
      %p197 = scmp.ne.s32.totalorder %s185, %s186
      %p198 = scmp.eq.s32.totalorder %s29, 1
      %p199 = por %p197, %p198
      %p201 = scmp.ne.s32.totalorder %s186, %s200
      %p202 = scmp.eq.s32.totalorder %s29, 0
      %p203 = por %p201, %p202
      %s205 = sadd.s32 %s204, 1
      %p208 = scmp.eq.s32.totalorder %s23, 1
      %p209 = scmp.ne.s32.totalorder %s204, %s206
      %p210 = scmp.eq.s32.totalorder %s23, 0
      %p211 = por %p209, %p210
      %p212 = scmp.ne.s32.totalorder %s204, %s206
      %p213 = scmp.eq.s32.totalorder %s28, 1
      %p214 = por %p212, %p213
      %p215 = scmp.ne.s32.totalorder %s206, %s207
      %p216 = scmp.eq.s32.totalorder %s28, 0
      %p217 = por %p215, %p216
      %p218 = scmp.ne.s32.totalorder %s206, %s207
      %p219 = scmp.eq.s32.totalorder %s29, 1
      %p220 = por %p218, %p219
      %p222 = scmp.ne.s32.totalorder %s207, %s221
      %p223 = scmp.eq.s32.totalorder %s29, 0
      %p224 = por %p222, %p223
      %s226 = sadd.s32 %s225, 1
      %p229 = scmp.eq.s32.totalorder %s23, 1
      %p230 = scmp.ne.s32.totalorder %s225, %s227
      %p231 = scmp.eq.s32.totalorder %s23, 0
      %p232 = por %p230, %p231
      %p233 = scmp.ne.s32.totalorder %s225, %s227
      %p234 = scmp.eq.s32.totalorder %s28, 1
      %p235 = por %p233, %p234
      %p236 = scmp.ne.s32.totalorder %s227, %s228
      %p237 = scmp.eq.s32.totalorder %s28, 0
      %p238 = por %p236, %p237
      %p239 = scmp.ne.s32.totalorder %s227, %s228
      %p240 = scmp.eq.s32.totalorder %s29, 1
      %p241 = por %p239, %p240
      %p243 = scmp.ne.s32.totalorder %s228, %s242
      %p244 = scmp.eq.s32.totalorder %s29, 0
      %p245 = por %p243, %p244
      %s247 = sadd.s32 %s246, 1
      %p250 = scmp.eq.s32.totalorder %s23, 1
      %p251 = scmp.ne.s32.totalorder %s246, %s248
      %p252 = scmp.eq.s32.totalorder %s23, 0
      %p253 = por %p251, %p252
      %p254 = scmp.ne.s32.totalorder %s246, %s248
      %p255 = scmp.eq.s32.totalorder %s28, 1
      %p256 = por %p254, %p255
      %p257 = scmp.ne.s32.totalorder %s248, %s249
      %p258 = scmp.eq.s32.totalorder %s28, 0
      %p259 = por %p257, %p258
      %p260 = scmp.ne.s32.totalorder %s248, %s249
      %p261 = scmp.eq.s32.totalorder %s29, 1
      %p262 = por %p260, %p261
      %p264 = scmp.ne.s32.totalorder %s249, %s263
      %p265 = scmp.eq.s32.totalorder %s29, 0
      %p266 = por %p264, %p265
      %s268 = sadd.s32 %s267, 1
      %p271 = scmp.eq.s32.totalorder %s23, 1
      %p272 = scmp.ne.s32.totalorder %s267, %s269
      %p273 = scmp.eq.s32.totalorder %s23, 0
      %p274 = por %p272, %p273
      %p275 = scmp.ne.s32.totalorder %s267, %s269
      %p276 = scmp.eq.s32.totalorder %s28, 1
      %p277 = por %p275, %p276
      %p278 = scmp.ne.s32.totalorder %s269, %s270
      %p279 = scmp.eq.s32.totalorder %s28, 0
      %p280 = por %p278, %p279
      %p281 = scmp.ne.s32.totalorder %s269, %s270
      %p282 = scmp.eq.s32.totalorder %s29, 1
      %p283 = por %p281, %p282
      %p285 = scmp.ne.s32.totalorder %s270, %s284
      %p286 = scmp.eq.s32.totalorder %s29, 0
      %p287 = por %p285, %p286
      %s288 = ssub.s32 %s23, %s30
      %p289 = scmp.eq.s32.totalorder %s288, 0
      %s291 = sadd.s32 %s290, 1
      %s292 = scalar_select %p289, %s290, %s291
      %p295 = pneg %p289
      %p296 = scmp.eq.s32.totalorder %s23, 1
      %p297 = por %p295, %p296
      %p298 = scmp.ne.s32.totalorder %s290, %s293
      %p299 = scmp.eq.s32.totalorder %s23, 0
      %p300 = por %p298, %p299
      %p301 = scmp.ne.s32.totalorder %s290, %s293
      %p302 = scmp.eq.s32.totalorder %s28, 1
      %p303 = por %p301, %p302
      %p304 = scmp.ne.s32.totalorder %s293, %s294
      %p305 = scmp.eq.s32.totalorder %s28, 0
      %p306 = por %p304, %p305
      %p307 = scmp.ne.s32.totalorder %s293, %s294
      %p308 = scmp.eq.s32.totalorder %s29, 1
      %p309 = por %p307, %p308
      %p311 = scmp.ne.s32.totalorder %s294, %s310
      %p312 = scmp.eq.s32.totalorder %s29, 0
      %p313 = por %p311, %p312
      %p314 = scmp.le.s32.totalorder 1, %s23
      %p315 = scmp.lt.s32.totalorder %s23, 3
      %p316 = pnand %p314, %p315
      %p317 = pneg %p316
      // Predicated region
      $region9: #{tpu_custom_call.1} parent=5 // pred_check
        _
      $region10: #{tpu_custom_call.1} parent=5 // pred_check_branch
        %319 = sbr.rel (%p316) target = $region12
      $region11: #{tpu_custom_call.1} parent=5 // pred_region
        %s320 = ssub.s32 %s23, 1
        // Predicated region
        $region13: #{tpu_custom_call.1} parent=11 // pred_check
          %p321 = pneg %p70
        $region14: #{tpu_custom_call.1} parent=11 // pred_check_branch
          %323 = sbr.rel (%p321) target = $region16
        $region15: #{tpu_custom_call.1} parent=11 // pred_region
          _
        $region16: #{tpu_custom_call.1} parent=11 // pred_fallthru
          _
        // Predicated region
        $region17: #{tpu_custom_call.1} parent=11 // pred_check
          %p324 = pneg %p91
        $region18: #{tpu_custom_call.1} parent=11 // pred_check_branch
          %326 = sbr.rel (%p324) target = $region20
        $region19: #{tpu_custom_call.1} parent=11 // pred_region
          _
        $region20: #{tpu_custom_call.1} parent=11 // pred_fallthru
          _
        // Predicated region
        $region21: #{tpu_custom_call.1} parent=11 // pred_check
          %p327 = pneg %p112
        $region22: #{tpu_custom_call.1} parent=11 // pred_check_branch
          %329 = sbr.rel (%p327) target = $region24
        $region23: #{tpu_custom_call.1} parent=11 // pred_region
          _
        $region24: #{tpu_custom_call.1} parent=11 // pred_fallthru
          _
        // Predicated region
        $region25: #{tpu_custom_call.1} parent=11 // pred_check
          %p330 = pneg %p133
        $region26: #{tpu_custom_call.1} parent=11 // pred_check_branch
          %332 = sbr.rel (%p330) target = $region28
        $region27: #{tpu_custom_call.1} parent=11 // pred_region
          _
        $region28: #{tpu_custom_call.1} parent=11 // pred_fallthru
          _
        // Predicated region
        $region29: #{tpu_custom_call.1} parent=11 // pred_check
          %p333 = pneg %p154
        $region30: #{tpu_custom_call.1} parent=11 // pred_check_branch
          %335 = sbr.rel (%p333) target = $region32
        $region31: #{tpu_custom_call.1} parent=11 // pred_region
          _
        $region32: #{tpu_custom_call.1} parent=11 // pred_fallthru
          _
        // Predicated region
        $region33: #{tpu_custom_call.1} parent=11 // pred_check
          %p336 = pneg %p175
        $region34: #{tpu_custom_call.1} parent=11 // pred_check_branch
          %338 = sbr.rel (%p336) target = $region36
        $region35: #{tpu_custom_call.1} parent=11 // pred_region
          _
        $region36: #{tpu_custom_call.1} parent=11 // pred_fallthru
          _
        // Predicated region
        $region37: #{tpu_custom_call.1} parent=11 // pred_check
          %p339 = pneg %p196
        $region38: #{tpu_custom_call.1} parent=11 // pred_check_branch
          %341 = sbr.rel (%p339) target = $region40
        $region39: #{tpu_custom_call.1} parent=11 // pred_region
          _
        $region40: #{tpu_custom_call.1} parent=11 // pred_fallthru
          _
        // Predicated region
        $region41: #{tpu_custom_call.1} parent=11 // pred_check
          %p342 = pneg %p217
        $region42: #{tpu_custom_call.1} parent=11 // pred_check_branch
          %344 = sbr.rel (%p342) target = $region44
        $region43: #{tpu_custom_call.1} parent=11 // pred_region
          %346 = vsyncadd [#allocation3], 0
          %s347 = sshll.u32 %s8, 4
          %s348 = int_to_ptr.hbm [resolvable:$true] %s347
          %s349 = sshll.u32 [#allocation2], 4
          %s350 = int_to_ptr.vmem [resolvable:$true] %s349
          %355 = dma.hbm_to_vmem [thread:$0]  %s348, 8192, %s350, [#allocation3], 512, 512, 32
        $region44: #{tpu_custom_call.1} parent=11 // pred_fallthru
          _
        // Predicated region
        $region45: #{tpu_custom_call.1} parent=11 // pred_check
          %p356 = pneg %p238
        $region46: #{tpu_custom_call.1} parent=11 // pred_check_branch
          %358 = sbr.rel (%p356) target = $region48
        $region47: #{tpu_custom_call.1} parent=11 // pred_region
          _
        $region48: #{tpu_custom_call.1} parent=11 // pred_fallthru
          _
        // Predicated region
        $region49: #{tpu_custom_call.1} parent=11 // pred_check
          %p359 = pneg %p259
        $region50: #{tpu_custom_call.1} parent=11 // pred_check_branch
          %361 = sbr.rel (%p359) target = $region52
        $region51: #{tpu_custom_call.1} parent=11 // pred_region
          %363 = vsyncadd [#allocation6], 0
          %s364 = sshll.u32 %s10, 4
          %s365 = int_to_ptr.hbm [resolvable:$true] %s364
          %s366 = sshll.u32 [#allocation5], 4
          %s367 = int_to_ptr.vmem [resolvable:$true] %s366
          %372 = dma.hbm_to_vmem [thread:$0]  %s365, 8192, %s367, [#allocation6], 128, 128, 8
        $region52: #{tpu_custom_call.1} parent=11 // pred_fallthru
          _
        // Predicated region
        $region53: #{tpu_custom_call.1} parent=11 // pred_check
          %p373 = pneg %p280
        $region54: #{tpu_custom_call.1} parent=11 // pred_check_branch
          %375 = sbr.rel (%p373) target = $region56
        $region55: #{tpu_custom_call.1} parent=11 // pred_region
          _
        $region56: #{tpu_custom_call.1} parent=11 // pred_fallthru
          _
      $region12: #{tpu_custom_call.1} parent=5 // pred_fallthru
        _
      %p376 = scmp.lt.s32.totalorder %s23, 2
      // Predicated region
      $region57: #{tpu_custom_call.1} parent=5 // pred_check
        %p377 = pneg %p376
      $region58: #{tpu_custom_call.1} parent=5 // pred_check_branch
        %379 = sbr.rel (%p377) target = $region60
      $region59: #{tpu_custom_call.1} parent=5 // pred_region
        // Predicated region
        $region61: #{tpu_custom_call.1} parent=59 // pred_check
          %p380 = pneg %p43
        $region62: #{tpu_custom_call.1} parent=59 // pred_check_branch
          %382 = sbr.rel (%p380) target = $region64
        $region63: #{tpu_custom_call.1} parent=59 // pred_region
          %p383 = scmp.lt.s32.totalorder %s23, 1
          %s384 = scalar_select %p383, %s23, 1
          %s385 = smul.addr %s384, 8
          %s386 = scalar_lea.vmem %s0, %s385
        $region64: #{tpu_custom_call.1} parent=59 // pred_fallthru
          _
      $region60: #{tpu_custom_call.1} parent=5 // pred_fallthru
        _
      %p387 = scmp.le.s32.totalorder 1, %s23
      %p388 = scmp.lt.s32.totalorder %s23, 3
      %p389 = pnand %p387, %p388
      %p390 = pneg %p389
      // Predicated region
      $region65: #{tpu_custom_call.1} parent=5 // pred_check
        _
      $region66: #{tpu_custom_call.1} parent=5 // pred_check_branch
        %392 = sbr.rel (%p389) target = $region68
      $region67: #{tpu_custom_call.1} parent=5 // pred_region
        %s393 = ssub.s32 %s23, 1
        // Predicated region
        $region69: #{tpu_custom_call.1} parent=67 // pred_check
          %p394 = pneg %p217
        $region70: #{tpu_custom_call.1} parent=67 // pred_check_branch
          %396 = sbr.rel (%p394) target = $region72
        $region71: #{tpu_custom_call.1} parent=67 // pred_region
          %398 = dma.done [#allocation3], 8192
        $region72: #{tpu_custom_call.1} parent=67 // pred_fallthru
          _
        // Predicated region
        $region73: #{tpu_custom_call.1} parent=67 // pred_check
          %p399 = pneg %p259
        $region74: #{tpu_custom_call.1} parent=67 // pred_check_branch
          %401 = sbr.rel (%p399) target = $region76
        $region75: #{tpu_custom_call.1} parent=67 // pred_region
          %403 = dma.done [#allocation6], 8192
        $region76: #{tpu_custom_call.1} parent=67 // pred_fallthru
          _
        %p404 = scmp.lt.s32.totalorder %s28, 1
        %s405 = scalar_select %p404, %s28, 1
        %s406 = smul.addr %s405, 8
        %s407 = scalar_lea.vmem %s0, %s406
        %p408 = pneg %p49
        %p409 = pneg %p46
        %p410 = pneg %p70
        %p411 = pneg %p67
        %p412 = pneg %p91
        %p413 = pneg %p88
        %p414 = pneg %p112
        %p415 = pneg %p109
        %p416 = pneg %p133
        %p417 = pneg %p130
        %p418 = pneg %p154
        %p419 = pneg %p151
        %p420 = pneg %p175
        %p421 = pneg %p172
        %p422 = pneg %p196
        %p423 = pneg %p193
        %p424 = pneg %p217
        %p425 = pneg %p214
        %p426 = pneg %p238
        %p427 = pneg %p235
        %p428 = pneg %p259
        %p429 = pneg %p256
        %p430 = pneg %p280
        %p431 = pneg %p277
        %p432 = pneg %p306
        %p433 = pneg %p303
        %s434 = sand.u32 %s293, 1
        %s435 = scalar_lea.sflag [#allocation4], %s434
        %s436 = sand.u32 %s293, 1
        %s437 = smul.addr %s436, 8
        %s438 = scalar_lea.vmem [#allocation7], %s437
        %p439 = scmp.lt.s32.totalorder %s28, 1
        %s440 = scalar_select %p439, %s28, 1
        %s441 = smul.addr %s440, 8
        %s442 = scalar_lea.vmem %s0, %s441
        %v443 = vld [vmem:[%s442] sm:$0xff]
        %v444 = vld [vmem:[%s1] sm:$0x1]
        %v445 = vld [vmem:[%s2] sm:$0x1]
        %446 = vadd.xlane.f32.xlu0 %v443
        %v447 = vpop.xlane.xlu0 %446
        %v448 = vrcp.pop 128.0
        %v449 = vmul.f32 128.0, %v448
        %v450 = vsub.f32 1.0, %v449
        %v451 = vmul.f32 %v448, %v450
        %v452 = vadd.f32 %v448, %v451
        %vm453 = vweird.f32 %v448
        %v454 = vsel %vm453, %v448, %v452
        %v455 = vmul.f32 %v447, %v454
        %v456 = vsub.f32 %v443, %v455
        %v457 = vmul.f32 %v456, %v456
        %458 = vadd.xlane.f32.xlu0 %v457
        %v459 = vpop.xlane.xlu0 %458
        %v460 = vmul.f32 %v459, %v454
        %v461 = vadd.f32 %v460, 1e-05
        %v462 = vrsqrt.pop %v461
        %v463 = vmul.f32 %v462, %v461
        %v464 = vmul.f32 %v463, %v462
        %v465 = vmul.f32 0.5, %v464
        %v466 = vsub.f32 1.5, %v465
        %v467 = vmul.f32 %v462, %v466
        %vm468 = vweird.f32 %v461
        %vm469 = vweird.f32 %v462
        %vm470 = vmor %vm468, %vm469
        %v471 = vsel %vm470, %v462, %v467
        %v472 = vmul.f32 %v456, %v471
        %v474 = vperm.slane %v444, 0
        %v476 = vmul.f32 %v472, %v474
        %v478 = vperm.slane %v445, 0
        %v480 = vadd.f32 %v476, %v478
        %v481 = vld [vmem:[%s3] sm:$0xff]
        %v482 = vld [vmem:[%s3 + $0x8] sm:$0xff]
        %v483 = vld [vmem:[%s3 + $0x10] sm:$0xff]
        %v484 = vld [vmem:[%s3 + $0x18] sm:$0xff]
        %v485 = vld [vmem:[%s3 + $0x20] sm:$0xff]
        %v486 = vld [vmem:[%s3 + $0x28] sm:$0xff]
        %v487 = vld [vmem:[%s3 + $0x30] sm:$0xff]
        %v488 = vld [vmem:[%s3 + $0x38] sm:$0xff]
        %v489 = vld [vmem:[%s3 + $0x40] sm:$0xff]
        %v490 = vld [vmem:[%s3 + $0x48] sm:$0xff]
        %v491 = vld [vmem:[%s3 + $0x50] sm:$0xff]
        %v492 = vld [vmem:[%s3 + $0x58] sm:$0xff]
        %v493 = vld [vmem:[%s3 + $0x60] sm:$0xff]
        %v494 = vld [vmem:[%s3 + $0x68] sm:$0xff]
        %v495 = vld [vmem:[%s3 + $0x70] sm:$0xff]
        %v496 = vld [vmem:[%s3 + $0x78] sm:$0xff]
        %497 = vmatpush.msra.mxu0 %v496
        %498 = vmatpush.msra.mxu0 %v495
        %499 = vmatpush.msra.mxu0 %v494
        %500 = vmatpush.msra.mxu0 %v493
        %501 = vmatpush.msra.mxu0 %v492
        %502 = vmatpush.msra.mxu0 %v491
        %503 = vmatpush.msra.mxu0 %v490
        %504 = vmatpush.msra.mxu0 %v489
        %505 = vmatpush.msra.mxu0 %v488
        %506 = vmatpush.msra.mxu0 %v487
        %507 = vmatpush.msra.mxu0 %v486
        %508 = vmatpush.msra.mxu0 %v485
        %509 = vmatpush.msra.mxu0 %v484
        %510 = vmatpush.msra.mxu0 %v483
        %511 = vmatpush.msra.mxu0 %v482
        %512 = vmatpush.msra.mxu0 %v481
        %513 = vmatmul.f32.gmra.mxu0 %v480
        %v514 = vpop.f32.mrf.mxu0
        %v515 = vadd.f32 0.0, %v514
        %516 = vdwg.mxu0
        %517 = vxpose.xlu0.b32.start [1/16] %v515, 128
        %518 = vxpose.xlu0.b32.cont [2/16] 0.0, 128
        %519 = vxpose.xlu0.b32.cont [3/16] 0.0, 128
        %520 = vxpose.xlu0.b32.cont [4/16] 0.0, 128
        %521 = vxpose.xlu0.b32.cont [5/16] 0.0, 128
        %522 = vxpose.xlu0.b32.cont [6/16] 0.0, 128
        %523 = vxpose.xlu0.b32.cont [7/16] 0.0, 128
        %524 = vxpose.xlu0.b32.cont [8/16] 0.0, 128
        %525 = vxpose.xlu0.b32.cont [9/16] 0.0, 128
        %526 = vxpose.xlu0.b32.cont [10/16] 0.0, 128
        %527 = vxpose.xlu0.b32.cont [11/16] 0.0, 128
        %528 = vxpose.xlu0.b32.cont [12/16] 0.0, 128
        %529 = vxpose.xlu0.b32.cont [13/16] 0.0, 128
        %530 = vxpose.xlu0.b32.cont [14/16] 0.0, 128
        %531 = vxpose.xlu0.b32.cont [15/16] 0.0, 128
        %532 = vxpose.xlu0.b32.end [16/16] 0.0, 128
        %v533 = vpop.trf.xlu0
        %v534 = vpop.trf.xlu0
        %v535 = vpop.trf.xlu0
        %v536 = vpop.trf.xlu0
        %v537 = vpop.trf.xlu0
        %v538 = vpop.trf.xlu0
        %v539 = vpop.trf.xlu0
        %v540 = vpop.trf.xlu0
        %v541 = vpop.trf.xlu0
        %v542 = vpop.trf.xlu0
        %v543 = vpop.trf.xlu0
        %v544 = vpop.trf.xlu0
        %v545 = vpop.trf.xlu0
        %v546 = vpop.trf.xlu0
        %v547 = vpop.trf.xlu0
        %v548 = vpop.trf.xlu0
        %v549 = vperm.slane %v533, 0
        %v550 = vlaneseq
        %v551 = vshrl.u32 %v550, 7
        %553 = vset.pattern.permute.xlu0 %v551
        %554 = vperm.xlu0 %553, %v549
        %v555 = vpop.permute.xlu0 %554
        %v556 = vperm.slane %v533, 1
        %v557 = vlaneseq
        %v558 = vshrl.u32 %v557, 7
        %560 = vset.pattern.permute.xlu0 %v558
        %561 = vperm.xlu0 %560, %v556
        %v562 = vpop.permute.xlu0 %561
        %564 = vst [vmem:[#allocation1] sm:$0xff] %v533
        %s565 = scalar_lea.vmem [#allocation1], 2
        %v566 = vld [vmem:[%s565] ss:$9 sm:$0xff]
        %s567 = scalar_lea.vmem [#allocation1], 3
        %v568 = vld [vmem:[%s567] ss:$9 sm:$0xff]
        %v569 = vperm.slane %v566, 0
        %v570 = vperm.slane %v568, 0
        %v573 = vmul.f32 %v555, %v569
        %v574 = vmul.f32 %v562, %v570
        %v575 = vmul.f32 %v573, 0.088388346
        %v576 = vmul.f32 %v574, 0.088388346
        %v577 = vlaneseq
        %v578 = vshrl.u32 %v577, 7
        %v579 = vlaneseq
        %v580 = vand.u32 %v579, 127
        %vm581 = vcmp.le.s32.totalorder %v580, %v578
        %v582 = vsel %vm581, 1, 0
        %vm583 = vcmp.eq.s32.totalorder %v582, 1
        %v584 = vsel %vm583, %v575, -1e+30
        %v585 = vsel %vm583, %v576, -1e+30
        %vm586 = vcmask 64512
        %v587 = vsel %vm586, %v584, -inf
        %588 = vmax.xlane.f32.xlu0 %v587
        %v589 = vpop.xlane.xlu0 %588
        %v590 = vsel %vm586, %v585, -inf
        %591 = vmax.xlane.f32.xlu0 %v590
        %v592 = vpop.xlane.xlu0 %591
        %v593 = vsub.f32 %v584, %v589
        %v594 = vsub.f32 %v585, %v592
        %v595 = vmul.f32 %v593, 1.442695
        %v596 = vpow.pop %v595
        %v597 = vmul.f32 %v594, 1.442695
        %v598 = vpow.pop %v597
        %v599 = vsel %vm586, %v596, 0.0
        %600 = vadd.xlane.f32.xlu0 %v599
        %v601 = vpop.xlane.xlu0 %600
        %v602 = vsel %vm586, %v598, 0.0
        %603 = vadd.xlane.f32.xlu0 %v602
        %v604 = vpop.xlane.xlu0 %603
        %v605 = vrcp.pop %v601
        %v606 = vrcp.pop %v604
        %v607 = vmul.f32 %v596, %v605
        %v608 = vmul.f32 %v598, %v606
        %609 = vst [vmem:[#allocation1] sm:$0xff] %v533
        %s610 = scalar_lea.vmem [#allocation1], 4
        %v611 = vld [vmem:[%s610] ss:$9 sm:$0xff]
        %s612 = scalar_lea.vmem [#allocation1], 5
        %v613 = vld [vmem:[%s612] ss:$9 sm:$0xff]
        %v614 = vperm.slane %v611, 0
        %v615 = vperm.slane %v613, 0
        %v618 = vmul.f32 %v607, %v614
        %v619 = vmul.f32 %v608, %v615
        %v620 = vsel %vm586, %v618, 0.0
        %621 = vadd.xlane.f32.xlu0 %v620
        %v622 = vpop.xlane.xlu0 %621
        %v623 = vsel %vm586, %v619, 0.0
        %624 = vadd.xlane.f32.xlu0 %v623
        %v625 = vpop.xlane.xlu0 %624
        %v628 = vperm.slane %v622, %v580
        %v629 = vperm.slane %v625, %v580
        %vm630 = vcmask 1041409
        %v631 = vsel %vm630, %v629, %v628
        %633 = vxpose.xlu0.b32.start [1/16] %v631, 128
        %634 = vxpose.xlu0.b32.cont [2/16] 0.0, 128
        %635 = vxpose.xlu0.b32.cont [3/16] 0.0, 128
        %636 = vxpose.xlu0.b32.cont [4/16] 0.0, 128
        %637 = vxpose.xlu0.b32.cont [5/16] 0.0, 128
        %638 = vxpose.xlu0.b32.cont [6/16] 0.0, 128
        %639 = vxpose.xlu0.b32.cont [7/16] 0.0, 128
        %640 = vxpose.xlu0.b32.cont [8/16] 0.0, 128
        %641 = vxpose.xlu0.b32.cont [9/16] 0.0, 128
        %642 = vxpose.xlu0.b32.cont [10/16] 0.0, 128
        %643 = vxpose.xlu0.b32.cont [11/16] 0.0, 128
        %644 = vxpose.xlu0.b32.cont [12/16] 0.0, 128
        %645 = vxpose.xlu0.b32.cont [13/16] 0.0, 128
        %646 = vxpose.xlu0.b32.cont [14/16] 0.0, 128
        %647 = vxpose.xlu0.b32.cont [15/16] 0.0, 128
        %648 = vxpose.xlu0.b32.end [16/16] 0.0, 128
        %v649 = vpop.trf.xlu0
        %v650 = vpop.trf.xlu0
        %v651 = vpop.trf.xlu0
        %v652 = vpop.trf.xlu0
        %v653 = vpop.trf.xlu0
        %v654 = vpop.trf.xlu0
        %v655 = vpop.trf.xlu0
        %v656 = vpop.trf.xlu0
        %v657 = vpop.trf.xlu0
        %v658 = vpop.trf.xlu0
        %v659 = vpop.trf.xlu0
        %v660 = vpop.trf.xlu0
        %v661 = vpop.trf.xlu0
        %v662 = vpop.trf.xlu0
        %v663 = vpop.trf.xlu0
        %v664 = vpop.trf.xlu0
        %v665 = vld [vmem:[%s4] sm:$0x3]
        %v666 = vld [vmem:[%s5] sm:$0x1]
        %v668 = vperm.slane %v666, 0
        %vm670 = vcmask 15360
        %v672 = vsel %vm670, %v649, 0
        %vm674 = vcmask 1041408
        %v676 = vsel %vm674, %v665, 0
        %678 = vmatpush.msra.mxu0 0.0
        %679 = vmatpush.msra.mxu0 0.0
        %680 = vmatpush.msra.mxu0 0.0
        %681 = vmatpush.msra.mxu0 0.0
        %682 = vmatpush.msra.mxu0 0.0
        %683 = vmatpush.msra.mxu0 0.0
        %684 = vmatpush.msra.mxu0 0.0
        %685 = vmatpush.msra.mxu0 0.0
        %686 = vmatpush.msra.mxu0 0.0
        %687 = vmatpush.msra.mxu0 0.0
        %688 = vmatpush.msra.mxu0 0.0
        %689 = vmatpush.msra.mxu0 0.0
        %690 = vmatpush.msra.mxu0 0.0
        %691 = vmatpush.msra.mxu0 0.0
        %692 = vmatpush.msra.mxu0 0.0
        %693 = vmatpush.msra.mxu0 %v676
        %694 = vmatmul.f32.gmra.mxu0 %v672
        %v695 = vpop.f32.mrf.mxu0
        %v696 = vadd.f32 %v668, %v695
        %697 = vdwg.mxu0
        %v698 = vadd.f32 %v443, %v696
        %v699 = vld [vmem:[%s6] sm:$0x1]
        %v700 = vld [vmem:[%s7] sm:$0x1]
        %701 = vadd.xlane.f32.xlu0 %v698
        %v702 = vpop.xlane.xlu0 %701
        %v703 = vmul.f32 %v702, %v454
        %v704 = vsub.f32 %v698, %v703
        %v705 = vmul.f32 %v704, %v704
        %706 = vadd.xlane.f32.xlu0 %v705
        %v707 = vpop.xlane.xlu0 %706
        %v708 = vmul.f32 %v707, %v454
        %v709 = vadd.f32 %v708, 1e-05
        %v710 = vrsqrt.pop %v709
        %v711 = vmul.f32 %v710, %v709
        %v712 = vmul.f32 %v711, %v710
        %v713 = vmul.f32 0.5, %v712
        %v714 = vsub.f32 1.5, %v713
        %v715 = vmul.f32 %v710, %v714
        %vm716 = vweird.f32 %v709
        %vm717 = vweird.f32 %v710
        %vm718 = vmor %vm716, %vm717
        %v719 = vsel %vm718, %v710, %v715
        %v720 = vmul.f32 %v704, %v719
        %v722 = vperm.slane %v699, 0
        %v724 = vmul.f32 %v720, %v722
        %v726 = vperm.slane %v700, 0
        %v728 = vadd.f32 %v724, %v726
        %v729 = vld [vmem:[#allocation2] sm:$0xff]
        %v730 = vld [vmem:[#allocation2 + $0x8] sm:$0xff]
        %v731 = vld [vmem:[#allocation2 + $0x10] sm:$0xff]
        %v732 = vld [vmem:[#allocation2 + $0x18] sm:$0xff]
        %v733 = vld [vmem:[#allocation2 + $0x20] sm:$0xff]
        %v734 = vld [vmem:[#allocation2 + $0x28] sm:$0xff]
        %v735 = vld [vmem:[#allocation2 + $0x30] sm:$0xff]
        %v736 = vld [vmem:[#allocation2 + $0x38] sm:$0xff]
        %v737 = vld [vmem:[#allocation2 + $0x40] sm:$0xff]
        %v738 = vld [vmem:[#allocation2 + $0x48] sm:$0xff]
        %v739 = vld [vmem:[#allocation2 + $0x50] sm:$0xff]
        %v740 = vld [vmem:[#allocation2 + $0x58] sm:$0xff]
        %v741 = vld [vmem:[#allocation2 + $0x60] sm:$0xff]
        %v742 = vld [vmem:[#allocation2 + $0x68] sm:$0xff]
        %v743 = vld [vmem:[#allocation2 + $0x70] sm:$0xff]
        %v744 = vld [vmem:[#allocation2 + $0x78] sm:$0xff]
        %v745 = vld [vmem:[#allocation2 + $0x80] sm:$0xff]
        %v746 = vld [vmem:[#allocation2 + $0x88] sm:$0xff]
        %v747 = vld [vmem:[#allocation2 + $0x90] sm:$0xff]
        %v748 = vld [vmem:[#allocation2 + $0x98] sm:$0xff]
        %v749 = vld [vmem:[#allocation2 + $0xa0] sm:$0xff]
        %v750 = vld [vmem:[#allocation2 + $0xa8] sm:$0xff]
        %v751 = vld [vmem:[#allocation2 + $0xb0] sm:$0xff]
        %v752 = vld [vmem:[#allocation2 + $0xb8] sm:$0xff]
        %v753 = vld [vmem:[#allocation2 + $0xc0] sm:$0xff]
        %v754 = vld [vmem:[#allocation2 + $0xc8] sm:$0xff]
        %v755 = vld [vmem:[#allocation2 + $0xd0] sm:$0xff]
        %v756 = vld [vmem:[#allocation2 + $0xd8] sm:$0xff]
        %v757 = vld [vmem:[#allocation2 + $0xe0] sm:$0xff]
        %v758 = vld [vmem:[#allocation2 + $0xe8] sm:$0xff]
        %v759 = vld [vmem:[#allocation2 + $0xf0] sm:$0xff]
        %v760 = vld [vmem:[#allocation2 + $0xf8] sm:$0xff]
        %v761 = vld [vmem:[#allocation2 + $0x100] sm:$0xff]
        %v762 = vld [vmem:[#allocation2 + $0x108] sm:$0xff]
        %v763 = vld [vmem:[#allocation2 + $0x110] sm:$0xff]
        %v764 = vld [vmem:[#allocation2 + $0x118] sm:$0xff]
        %v765 = vld [vmem:[#allocation2 + $0x120] sm:$0xff]
        %v766 = vld [vmem:[#allocation2 + $0x128] sm:$0xff]
        %v767 = vld [vmem:[#allocation2 + $0x130] sm:$0xff]
        %v768 = vld [vmem:[#allocation2 + $0x138] sm:$0xff]
        %v769 = vld [vmem:[#allocation2 + $0x140] sm:$0xff]
        %v770 = vld [vmem:[#allocation2 + $0x148] sm:$0xff]
        %v771 = vld [vmem:[#allocation2 + $0x150] sm:$0xff]
        %v772 = vld [vmem:[#allocation2 + $0x158] sm:$0xff]
        %v773 = vld [vmem:[#allocation2 + $0x160] sm:$0xff]
        %v774 = vld [vmem:[#allocation2 + $0x168] sm:$0xff]
        %v775 = vld [vmem:[#allocation2 + $0x170] sm:$0xff]
        %v776 = vld [vmem:[#allocation2 + $0x178] sm:$0xff]
        %v777 = vld [vmem:[#allocation2 + $0x180] sm:$0xff]
        %v778 = vld [vmem:[#allocation2 + $0x188] sm:$0xff]
        %v779 = vld [vmem:[#allocation2 + $0x190] sm:$0xff]
        %v780 = vld [vmem:[#allocation2 + $0x198] sm:$0xff]
        %v781 = vld [vmem:[#allocation2 + $0x1a0] sm:$0xff]
        %v782 = vld [vmem:[#allocation2 + $0x1a8] sm:$0xff]
        %v783 = vld [vmem:[#allocation2 + $0x1b0] sm:$0xff]
        %v784 = vld [vmem:[#allocation2 + $0x1b8] sm:$0xff]
        %v785 = vld [vmem:[#allocation2 + $0x1c0] sm:$0xff]
        %v786 = vld [vmem:[#allocation2 + $0x1c8] sm:$0xff]
        %v787 = vld [vmem:[#allocation2 + $0x1d0] sm:$0xff]
        %v788 = vld [vmem:[#allocation2 + $0x1d8] sm:$0xff]
        %v789 = vld [vmem:[#allocation2 + $0x1e0] sm:$0xff]
        %v790 = vld [vmem:[#allocation2 + $0x1e8] sm:$0xff]
        %v791 = vld [vmem:[#allocation2 + $0x1f0] sm:$0xff]
        %v792 = vld [vmem:[#allocation2 + $0x1f8] sm:$0xff]
        %v793 = vld [vmem:[%s9] sm:$0xf]
        %v795 = vperm.slane %v793, 0
        %v796 = vperm.slane %v793, 1
        %v797 = vperm.slane %v793, 2
        %v798 = vperm.slane %v793, 3
        %803 = vmatpush.msra.mxu0 %v789
        %804 = vmatpush.msra.mxu0 %v785
        %805 = vmatpush.msra.mxu0 %v781
        %806 = vmatpush.msra.mxu0 %v777
        %807 = vmatpush.msra.mxu0 %v773
        %808 = vmatpush.msra.mxu0 %v769
        %809 = vmatpush.msra.mxu0 %v765
        %810 = vmatpush.msra.mxu0 %v761
        %811 = vmatpush.msra.mxu0 %v757
        %812 = vmatpush.msra.mxu0 %v753
        %813 = vmatpush.msra.mxu0 %v749
        %814 = vmatpush.msra.mxu0 %v745
        %815 = vmatpush.msra.mxu0 %v741
        %816 = vmatpush.msra.mxu0 %v737
        %817 = vmatpush.msra.mxu0 %v733
        %818 = vmatpush.msra.mxu0 %v729
        %819 = vmatmul.f32.gmra.mxu0 %v728
        %v820 = vpop.f32.mrf.mxu0
        %v821 = vadd.f32 %v795, %v820
        %822 = vdwg.mxu0
        %823 = vmatpush.msra.mxu0 %v790
        %824 = vmatpush.msra.mxu0 %v786
        %825 = vmatpush.msra.mxu0 %v782
        %826 = vmatpush.msra.mxu0 %v778
        %827 = vmatpush.msra.mxu0 %v774
        %828 = vmatpush.msra.mxu0 %v770
        %829 = vmatpush.msra.mxu0 %v766
        %830 = vmatpush.msra.mxu0 %v762
        %831 = vmatpush.msra.mxu0 %v758
        %832 = vmatpush.msra.mxu0 %v754
        %833 = vmatpush.msra.mxu0 %v750
        %834 = vmatpush.msra.mxu0 %v746
        %835 = vmatpush.msra.mxu0 %v742
        %836 = vmatpush.msra.mxu0 %v738
        %837 = vmatpush.msra.mxu0 %v734
        %838 = vmatpush.msra.mxu0 %v730
        %839 = vmatmul.f32.gmra.mxu0 %v728
        %v840 = vpop.f32.mrf.mxu0
        %v841 = vadd.f32 %v796, %v840
        %842 = vdwg.mxu0
        %843 = vmatpush.msra.mxu0 %v791
        %844 = vmatpush.msra.mxu0 %v787
        %845 = vmatpush.msra.mxu0 %v783
        %846 = vmatpush.msra.mxu0 %v779
        %847 = vmatpush.msra.mxu0 %v775
        %848 = vmatpush.msra.mxu0 %v771
        %849 = vmatpush.msra.mxu0 %v767
        %850 = vmatpush.msra.mxu0 %v763
        %851 = vmatpush.msra.mxu0 %v759
        %852 = vmatpush.msra.mxu0 %v755
        %853 = vmatpush.msra.mxu0 %v751
        %854 = vmatpush.msra.mxu0 %v747
        %855 = vmatpush.msra.mxu0 %v743
        %856 = vmatpush.msra.mxu0 %v739
        %857 = vmatpush.msra.mxu0 %v735
        %858 = vmatpush.msra.mxu0 %v731
        %859 = vmatmul.f32.gmra.mxu0 %v728
        %v860 = vpop.f32.mrf.mxu0
        %v861 = vadd.f32 %v797, %v860
        %862 = vdwg.mxu0
        %863 = vmatpush.msra.mxu0 %v792
        %864 = vmatpush.msra.mxu0 %v788
        %865 = vmatpush.msra.mxu0 %v784
        %866 = vmatpush.msra.mxu0 %v780
        %867 = vmatpush.msra.mxu0 %v776
        %868 = vmatpush.msra.mxu0 %v772
        %869 = vmatpush.msra.mxu0 %v768
        %870 = vmatpush.msra.mxu0 %v764
        %871 = vmatpush.msra.mxu0 %v760
        %872 = vmatpush.msra.mxu0 %v756
        %873 = vmatpush.msra.mxu0 %v752
        %874 = vmatpush.msra.mxu0 %v748
        %875 = vmatpush.msra.mxu0 %v744
        %876 = vmatpush.msra.mxu0 %v740
        %877 = vmatpush.msra.mxu0 %v736
        %878 = vmatpush.msra.mxu0 %v732
        %879 = vmatmul.f32.gmra.mxu0 %v728
        %v880 = vpop.f32.mrf.mxu0
        %v881 = vadd.f32 %v798, %v880
        %882 = vdwg.mxu0
        %v883 = vmax.f32 %v821, 0.0
        %v884 = vmax.f32 %v841, 0.0
        %v885 = vmax.f32 %v861, 0.0
        %v886 = vmax.f32 %v881, 0.0
        %v887 = vld [vmem:[#allocation5] sm:$0xff]
        %v888 = vld [vmem:[#allocation5 + $0x8] sm:$0xff]
        %v889 = vld [vmem:[#allocation5 + $0x10] sm:$0xff]
        %v890 = vld [vmem:[#allocation5 + $0x18] sm:$0xff]
        %v891 = vld [vmem:[#allocation5 + $0x20] sm:$0xff]
        %v892 = vld [vmem:[#allocation5 + $0x28] sm:$0xff]
        %v893 = vld [vmem:[#allocation5 + $0x30] sm:$0xff]
        %v894 = vld [vmem:[#allocation5 + $0x38] sm:$0xff]
        %v895 = vld [vmem:[#allocation5 + $0x40] sm:$0xff]
        %v896 = vld [vmem:[#allocation5 + $0x48] sm:$0xff]
        %v897 = vld [vmem:[#allocation5 + $0x50] sm:$0xff]
        %v898 = vld [vmem:[#allocation5 + $0x58] sm:$0xff]
        %v899 = vld [vmem:[#allocation5 + $0x60] sm:$0xff]
        %v900 = vld [vmem:[#allocation5 + $0x68] sm:$0xff]
        %v901 = vld [vmem:[#allocation5 + $0x70] sm:$0xff]
        %v902 = vld [vmem:[#allocation5 + $0x78] sm:$0xff]
        %v903 = vld [vmem:[#allocation5 + $0x80] sm:$0xff]
        %v904 = vld [vmem:[#allocation5 + $0x88] sm:$0xff]
        %v905 = vld [vmem:[#allocation5 + $0x90] sm:$0xff]
        %v906 = vld [vmem:[#allocation5 + $0x98] sm:$0xff]
        %v907 = vld [vmem:[#allocation5 + $0xa0] sm:$0xff]
        %v908 = vld [vmem:[#allocation5 + $0xa8] sm:$0xff]
        %v909 = vld [vmem:[#allocation5 + $0xb0] sm:$0xff]
        %v910 = vld [vmem:[#allocation5 + $0xb8] sm:$0xff]
        %v911 = vld [vmem:[#allocation5 + $0xc0] sm:$0xff]
        %v912 = vld [vmem:[#allocation5 + $0xc8] sm:$0xff]
        %v913 = vld [vmem:[#allocation5 + $0xd0] sm:$0xff]
        %v914 = vld [vmem:[#allocation5 + $0xd8] sm:$0xff]
        %v915 = vld [vmem:[#allocation5 + $0xe0] sm:$0xff]
        %v916 = vld [vmem:[#allocation5 + $0xe8] sm:$0xff]
        %v917 = vld [vmem:[#allocation5 + $0xf0] sm:$0xff]
        %v918 = vld [vmem:[#allocation5 + $0xf8] sm:$0xff]
        %v919 = vld [vmem:[#allocation5 + $0x100] sm:$0xff]
        %v920 = vld [vmem:[#allocation5 + $0x108] sm:$0xff]
        %v921 = vld [vmem:[#allocation5 + $0x110] sm:$0xff]
        %v922 = vld [vmem:[#allocation5 + $0x118] sm:$0xff]
        %v923 = vld [vmem:[#allocation5 + $0x120] sm:$0xff]
        %v924 = vld [vmem:[#allocation5 + $0x128] sm:$0xff]
        %v925 = vld [vmem:[#allocation5 + $0x130] sm:$0xff]
        %v926 = vld [vmem:[#allocation5 + $0x138] sm:$0xff]
        %v927 = vld [vmem:[#allocation5 + $0x140] sm:$0xff]
        %v928 = vld [vmem:[#allocation5 + $0x148] sm:$0xff]
        %v929 = vld [vmem:[#allocation5 + $0x150] sm:$0xff]
        %v930 = vld [vmem:[#allocation5 + $0x158] sm:$0xff]
        %v931 = vld [vmem:[#allocation5 + $0x160] sm:$0xff]
        %v932 = vld [vmem:[#allocation5 + $0x168] sm:$0xff]
        %v933 = vld [vmem:[#allocation5 + $0x170] sm:$0xff]
        %v934 = vld [vmem:[#allocation5 + $0x178] sm:$0xff]
        %v935 = vld [vmem:[#allocation5 + $0x180] sm:$0xff]
        %v936 = vld [vmem:[#allocation5 + $0x188] sm:$0xff]
        %v937 = vld [vmem:[#allocation5 + $0x190] sm:$0xff]
        %v938 = vld [vmem:[#allocation5 + $0x198] sm:$0xff]
        %v939 = vld [vmem:[#allocation5 + $0x1a0] sm:$0xff]
        %v940 = vld [vmem:[#allocation5 + $0x1a8] sm:$0xff]
        %v941 = vld [vmem:[#allocation5 + $0x1b0] sm:$0xff]
        %v942 = vld [vmem:[#allocation5 + $0x1b8] sm:$0xff]
        %v943 = vld [vmem:[#allocation5 + $0x1c0] sm:$0xff]
        %v944 = vld [vmem:[#allocation5 + $0x1c8] sm:$0xff]
        %v945 = vld [vmem:[#allocation5 + $0x1d0] sm:$0xff]
        %v946 = vld [vmem:[#allocation5 + $0x1d8] sm:$0xff]
        %v947 = vld [vmem:[#allocation5 + $0x1e0] sm:$0xff]
        %v948 = vld [vmem:[#allocation5 + $0x1e8] sm:$0xff]
        %v949 = vld [vmem:[#allocation5 + $0x1f0] sm:$0xff]
        %v950 = vld [vmem:[#allocation5 + $0x1f8] sm:$0xff]
        %v951 = vld [vmem:[%s11] sm:$0x1]
        %v953 = vperm.slane %v951, 0
        %955 = vmatpush.msra.mxu0 %v902
        %956 = vmatpush.msra.mxu0 %v901
        %957 = vmatpush.msra.mxu0 %v900
        %958 = vmatpush.msra.mxu0 %v899
        %959 = vmatpush.msra.mxu0 %v898
        %960 = vmatpush.msra.mxu0 %v897
        %961 = vmatpush.msra.mxu0 %v896
        %962 = vmatpush.msra.mxu0 %v895
        %963 = vmatpush.msra.mxu0 %v894
        %964 = vmatpush.msra.mxu0 %v893
        %965 = vmatpush.msra.mxu0 %v892
        %966 = vmatpush.msra.mxu0 %v891
        %967 = vmatpush.msra.mxu0 %v890
        %968 = vmatpush.msra.mxu0 %v889
        %969 = vmatpush.msra.mxu0 %v888
        %970 = vmatpush.msra.mxu0 %v887
        %971 = vmatmul.f32.gmra.mxu0 %v883
        %v972 = vpop.f32.mrf.mxu0
        %v973 = vadd.f32 %v953, %v972
        %974 = vdwg.mxu0
        %975 = vmatpush.msra.mxu0 %v918
        %976 = vmatpush.msra.mxu0 %v917
        %977 = vmatpush.msra.mxu0 %v916
        %978 = vmatpush.msra.mxu0 %v915
        %979 = vmatpush.msra.mxu0 %v914
        %980 = vmatpush.msra.mxu0 %v913
        %981 = vmatpush.msra.mxu0 %v912
        %982 = vmatpush.msra.mxu0 %v911
        %983 = vmatpush.msra.mxu0 %v910
        %984 = vmatpush.msra.mxu0 %v909
        %985 = vmatpush.msra.mxu0 %v908
        %986 = vmatpush.msra.mxu0 %v907
        %987 = vmatpush.msra.mxu0 %v906
        %988 = vmatpush.msra.mxu0 %v905
        %989 = vmatpush.msra.mxu0 %v904
        %990 = vmatpush.msra.mxu0 %v903
        %991 = vmatmul.f32.gmra.mxu0 %v884
        %v992 = vpop.f32.mrf.mxu0
        %v993 = vadd.f32 %v973, %v992
        %994 = vdwg.mxu0
        %995 = vmatpush.msra.mxu0 %v934
        %996 = vmatpush.msra.mxu0 %v933
        %997 = vmatpush.msra.mxu0 %v932
        %998 = vmatpush.msra.mxu0 %v931
        %999 = vmatpush.msra.mxu0 %v930
        %1000 = vmatpush.msra.mxu0 %v929
        %1001 = vmatpush.msra.mxu0 %v928
        %1002 = vmatpush.msra.mxu0 %v927
        %1003 = vmatpush.msra.mxu0 %v926
        %1004 = vmatpush.msra.mxu0 %v925
        %1005 = vmatpush.msra.mxu0 %v924
        %1006 = vmatpush.msra.mxu0 %v923
        %1007 = vmatpush.msra.mxu0 %v922
        %1008 = vmatpush.msra.mxu0 %v921
        %1009 = vmatpush.msra.mxu0 %v920
        %1010 = vmatpush.msra.mxu0 %v919
        %1011 = vmatmul.f32.gmra.mxu0 %v885
        %v1012 = vpop.f32.mrf.mxu0
        %v1013 = vadd.f32 %v993, %v1012
        %1014 = vdwg.mxu0
        %1015 = vmatpush.msra.mxu0 %v950
        %1016 = vmatpush.msra.mxu0 %v949
        %1017 = vmatpush.msra.mxu0 %v948
        %1018 = vmatpush.msra.mxu0 %v947
        %1019 = vmatpush.msra.mxu0 %v946
        %1020 = vmatpush.msra.mxu0 %v945
        %1021 = vmatpush.msra.mxu0 %v944
        %1022 = vmatpush.msra.mxu0 %v943
        %1023 = vmatpush.msra.mxu0 %v942
        %1024 = vmatpush.msra.mxu0 %v941
        %1025 = vmatpush.msra.mxu0 %v940
        %1026 = vmatpush.msra.mxu0 %v939
        %1027 = vmatpush.msra.mxu0 %v938
        %1028 = vmatpush.msra.mxu0 %v937
        %1029 = vmatpush.msra.mxu0 %v936
        %1030 = vmatpush.msra.mxu0 %v935
        %1031 = vmatmul.f32.gmra.mxu0 %v886
        %v1032 = vpop.f32.mrf.mxu0
        %v1033 = vadd.f32 %v1013, %v1032
        %1034 = vdwg.mxu0
        %v1035 = vadd.f32 %v698, %v1033
        %1036 = vst [vmem:[%s438] sm:$0xff] %v1035
        %s1037 = sand.u32 %s293, 1
        %s1038 = scalar_lea.sflag [#allocation4], %s1037
        %s1039 = sand.u32 %s293, 1
        %s1040 = smul.addr %s1039, 8
        %s1041 = scalar_lea.vmem [#allocation7], %s1040
        // Predicated region
        $region77: #{tpu_custom_call.1} parent=67 // pred_check
          %p1042 = pneg %p303
        $region78: #{tpu_custom_call.1} parent=67 // pred_check_branch
          %1044 = sbr.rel (%p1042) target = $region80
        $region79: #{tpu_custom_call.1} parent=67 // pred_region
          %1046 = vsyncadd %s1038, 0
          %s1047 = smul.addr %s28, 8
          %s1048 = scalar_lea.hbm %s12, %s1047
          %s1050 = sshll.u32 %s1041, 4
          %s1051 = int_to_ptr.vmem [resolvable:$true] %s1050
          %s1052 = sshll.u32 %s1048, 4
          %s1053 = int_to_ptr.hbm [resolvable:$true] %s1052
          %1055 = dma.vmem_to_hbm [thread:$0]  %s1051, 128, %s1053, %s1038
        $region80: #{tpu_custom_call.1} parent=67 // pred_fallthru
          _
      $region68: #{tpu_custom_call.1} parent=5 // pred_fallthru
        _
      %p1056 = scmp.le.s32.totalorder 2, %s23
      // Predicated region
      $region81: #{tpu_custom_call.1} parent=5 // pred_check
        %p1057 = pneg %p1056
      $region82: #{tpu_custom_call.1} parent=5 // pred_check_branch
        %1059 = sbr.rel (%p1057) target = $region84
      $region83: #{tpu_custom_call.1} parent=5 // pred_region
        %s1060 = ssub.s32 %s23, 2
        // Predicated region
        $region85: #{tpu_custom_call.1} parent=83 // pred_check
          %p1061 = pneg %p309
        $region86: #{tpu_custom_call.1} parent=83 // pred_check_branch
          %1063 = sbr.rel (%p1061) target = $region88
        $region87: #{tpu_custom_call.1} parent=83 // pred_region
          %s1064 = sand.u32 %s294, 1
          %s1065 = scalar_lea.sflag [#allocation4], %s1064
          %s1066 = sand.u32 %s294, 1
          %s1067 = smul.addr %s1066, 8
          %s1068 = scalar_lea.vmem [#allocation7], %s1067
          %1070 = dma.done %s1065, 128
        $region88: #{tpu_custom_call.1} parent=83 // pred_fallthru
          _
      $region84: #{tpu_custom_call.1} parent=5 // pred_fallthru
        _
    $region6: #{tpu_custom_call.1} parent=1 // loop_footer
      %s27 = sadd.s32 1, %s23
    $region7: #{tpu_custom_call.1} parent=1 // loop_footer_branch
      %22 = sbr.rel target = $region3
    $region8: #{tpu_custom_call.1} parent=1 // loop_exit
      _
    %1071 = vsyncpa [#allocation3], 1
    %s1072 = scalar_lea.sflag [#allocation3], 1
    %1073 = vsyncpa %s1072, 1
    %1074 = vsyncpa [#allocation6], 1
    %1075 = vsyncpa [#allocation4], 1
    %s1076 = scalar_lea.sflag [#allocation4], 1
    %1077 = vsyncpa %s1076, 1

</llo_original>
